<compile_context>
chip_gen: v7x
topology: tpu7x:2x2x1
jax: 0.10.0
libtpu: 0.0.40
codegen_flags: <defaults>
</compile_context>

<pallas_src>
import jax
import jax.numpy as jnp
from jax.experimental import pallas as pl
from jax.experimental.pallas import tpu as pltpu


def shader_kernel(g_ref, b_ref, o_ref):
    # g_ref: (3, C, TP) bf16 vertex colors; b_ref: (3, 1, TP) bf16 weights; o_ref: (C, TP) f32
    g = g_ref[...].astype(jnp.float32)
    b = b_ref[...].astype(jnp.float32)
    o_ref[...] = jnp.sum(b * g, axis=0)          # barycentric interpolation (bg already zeroed)


def soft_shader_pallas(pix_to_face, bary_coords, faces, verts_colors, *, tile_p=8192):
    """Pallas implementation of myShader.forward.

    pix_to_face:  (N, H, W, K) int32, -1 => background
    bary_coords:  (N, H, W, K, 3) float32
    faces:        (F, 3) int32  vertex indices per face
    verts_colors: (V, C) float32 per-vertex texture (TexturesVertex semantics)
    returns       (N, H, W, C) float32 pixel colors
    """
    N, H, W, K = pix_to_face.shape
    C = verts_colors.shape[-1]
    P = N * H * W

    # Effective tile (multiple of 128) and padded pixel count — no divisibility requirement on P.
    tile_p = max(128, (tile_p // 128) * 128)
    tile_p_eff = min(tile_p, ((P + 127) // 128) * 128)
    p_pad = pl.cdiv(P, tile_p_eff) * tile_p_eff

    # --- glue (plain JAX, HBM gather): produce (3, C, P) directly, lane-dense ---
    # Transpose the tiny per-face color table first so the big gather writes the kernel layout.
    face_cols_t = verts_colors.astype(jnp.bfloat16)[faces].transpose(1, 2, 0)   # (3, C, F)
    p2f0 = pix_to_face[..., 0].astype(jnp.int32)                                 # (N, H, W)
    idx = jnp.clip(p2f0, 0, None).reshape(P)                                     # bg reads face 0
    g_k = face_cols_t[:, :, idx]                                                 # (3, C, P) bf16

    # Fold the background mask into the weights (background color is zeros in the reference).
    valid = (p2f0 >= 0).astype(bary_coords.dtype)                                # (N, H, W)
    bary0 = bary_coords[..., 0, :] * valid[..., None]                            # (N, H, W, 3)
    b_k = jnp.moveaxis(bary0, -1, 0).reshape(3, 1, P).astype(jnp.bfloat16)       # (3, 1, P) bf16

    if p_pad != P:
        g_k = jnp.pad(g_k, ((0, 0), (0, 0), (0, p_pad - P)))
        b_k = jnp.pad(b_k, ((0, 0), (0, 0), (0, p_pad - P)))

    out_cp = pl.pallas_call(
        shader_kernel,
        out_shape=jax.ShapeDtypeStruct((C, p_pad), jnp.float32),
        grid_spec=pltpu.PrefetchScalarGridSpec(
            num_scalar_prefetch=0,
            grid=(p_pad // tile_p_eff,),
            in_specs=[
                pl.BlockSpec((3, C, tile_p_eff), lambda i: (0, 0, i)),
                pl.BlockSpec((3, 1, tile_p_eff), lambda i: (0, 0, i)),
            ],
            out_specs=pl.BlockSpec((C, tile_p_eff), lambda i: (0, i)),
        ),
        compiler_params=pltpu.CompilerParams(
            dimension_semantics=("parallel",)),
    )(g_k, b_k)

    return out_cp[:, :P].T.reshape(N, H, W, C)


def soft_shader_ref(pix_to_face, bary_coords, faces, verts_colors):
    """Pure-JAX f32 reference mirroring the PyTorch module semantics."""
    C = verts_colors.shape[-1]
    face_cols = verts_colors[faces]                          # (F, 3, C)
    idx = jnp.clip(pix_to_face, 0, None)
    texels = jnp.einsum("nhwkv,nhwkvc->nhwkc",
                        bary_coords, face_cols[idx])         # sample_textures (TexturesVertex)
    is_background = pix_to_face[..., 0] < 0
    pixel_colors = texels[..., 0, :]
    background_color = jnp.zeros((C,), jnp.float32)
    return jnp.where(is_background[..., None], background_color, pixel_colors)


if __name__ == "__main__":
    key = jax.random.PRNGKey(0)
    N, H, W, K, C, V, F = 2, 16, 16, 4, 4, 10, 12

    k1, k2, k3, k4 = jax.random.split(key, 4)
    pix_to_face = jax.random.randint(k1, (N, H, W, K), -1, F, dtype=jnp.int32)
    bary = jax.random.uniform(k2, (N, H, W, K, 3), jnp.float32) + 1e-3
    bary = bary / jnp.sum(bary, axis=-1, keepdims=True)
    faces = jax.random.randint(k3, (F, 3), 0, V, dtype=jnp.int32)
    verts_colors = jax.random.uniform(k4, (V, C), jnp.float32)

    out = soft_shader_pallas(pix_to_face, bary, faces, verts_colors)
    out = jax.block_until_ready(out)
    ref = soft_shader_ref(pix_to_face, bary, faces, verts_colors)
    assert out.shape == (N, H, W, C)
    # bf16 input storage => slightly looser tolerance than pure f32.
    assert jnp.allclose(out, ref, atol=2e-2, rtol=2e-2)

    # Second case with a pixel count that is NOT a multiple of 128 (exercises tail padding).
    H2, W2 = 15, 17
    p2f_b = jax.random.randint(k1, (N, H2, W2, K), -1, F, dtype=jnp.int32)
    bary_b = jax.random.uniform(k2, (N, H2, W2, K, 3), jnp.float32) + 1e-3
    bary_b = bary_b / jnp.sum(bary_b, axis=-1, keepdims=True)
    out_b = jax.block_until_ready(soft_shader_pallas(p2f_b, bary_b, faces, verts_colors))
    ref_b = soft_shader_ref(p2f_b, bary_b, faces, verts_colors)
    assert out_b.shape == (N, H2, W2, C)
    assert jnp.allclose(out_b, ref_b, atol=2e-2, rtol=2e-2)

    # TODO(synk): blend_params is unused by the reference forward (hard slot-0 shading with a
    # hard-coded zero background), so it is intentionally not modeled.
    print("KERNEL_OK")
</pallas_src>

<mosaic_0001>
module attributes {stable_mosaic.version = 11 : i64} {
  func.func @shader_kernel(%arg0: i32, %arg1: memref<3x4x512xbf16, #tpu.memory_space<vmem>>, %arg2: memref<3x1x512xbf16, #tpu.memory_space<vmem>>, %arg3: memref<4x512xf32, #tpu.memory_space<vmem>>) attributes {dimension_semantics = [#tpu.dimension_semantics<parallel>], iteration_bounds = array<i64: 1>, scalar_prefetch = 0 : i64, scratch_operands = 0 : i64, tpu.core_type = #tpu.core_type<tc>, window_params = [{transform_indices = @transform_0, window_bounds = array<i64: 3, 4, 512>}, {transform_indices = @transform_1, window_bounds = array<i64: 3, 1, 512>}, {transform_indices = @transform_2, window_bounds = array<i64: 4, 512>}]} {
    %c0 = arith.constant 0 : index
    %c0_0 = arith.constant 0 : index
    %c0_1 = arith.constant 0 : index
    %0 = vector.load %arg1[%c0, %c0_0, %c0_1] : memref<3x4x512xbf16, #tpu.memory_space<vmem>>, vector<3x4x512xbf16>
    %1 = arith.extf %0 : vector<3x4x512xbf16> to vector<3x4x512xf32>
    %c0_2 = arith.constant 0 : index
    %c0_3 = arith.constant 0 : index
    %c0_4 = arith.constant 0 : index
    %2 = vector.load %arg2[%c0_2, %c0_3, %c0_4] : memref<3x1x512xbf16, #tpu.memory_space<vmem>>, vector<3x1x512xbf16>
    %3 = arith.extf %2 : vector<3x1x512xbf16> to vector<3x1x512xf32>
    %4 = vector.broadcast %3 : vector<3x1x512xf32> to vector<3x4x512xf32>
    %5 = arith.mulf %4, %1 : vector<3x4x512xf32>
    %cst = arith.constant dense<0.000000e+00> : vector<4x512xf32>
    %6 = vector.multi_reduction <add>, %5, %cst [0] : vector<3x4x512xf32> to vector<4x512xf32>
    %c0_5 = arith.constant 0 : index
    %c0_6 = arith.constant 0 : index
    %7 = vector.load %arg3[%c0_5, %c0_6] : memref<4x512xf32, #tpu.memory_space<vmem>>, vector<4x512xf32>
    tpu.vector_store %arg3[%c0_5, %c0_6], %6 {strides = array<i32>} : memref<4x512xf32, #tpu.memory_space<vmem>>, vector<4x512xf32>,
    return
  }
  func.func @transform_0(%arg0: i32) -> (i32, i32, i32) {
    %c0_i32 = arith.constant 0 : i32
    %c0_i32_0 = arith.constant 0 : i32
    %c0_i32_1 = arith.constant 0 : i32
    return %c0_i32, %c0_i32_0, %arg0 : i32, i32, i32
  }
  func.func @transform_1(%arg0: i32) -> (i32, i32, i32) {
    %c0_i32 = arith.constant 0 : i32
    %c0_i32_0 = arith.constant 0 : i32
    %c0_i32_1 = arith.constant 0 : i32
    return %c0_i32, %c0_i32_0, %arg0 : i32, i32, i32
  }
  func.func @transform_2(%arg0: i32) -> (i32, i32) {
    %c0_i32 = arith.constant 0 : i32
    %c0_i32_0 = arith.constant 0 : i32
    return %c0_i32, %arg0 : i32, i32
  }
}

</mosaic_0001>

<llo_original>
// kernel: tpu_custom_call.1
$region0: #{tpu_custom_call.1}
  #allocation0 [shape = 'u32[]', space=smem, size = 0x4, offset = 0x4, fixed_abs, tag = 'smem constant byte address 0x4 - core index']
  #allocation1 [shape = 'u32[144,128]{1,0:T(1,128)}', space=vmem, size = 0x12000, scoped, tag = 'internal scratch']
  %s0 = inlined_call_operand.hbm [shape: bf16[3,4,512], index: 0, kind: input, shape index: {}]
  %s1 = inlined_call_operand.vmem [shape: bf16[3,1,512], index: 1, kind: input, shape index: {}]
  %s2 = inlined_call_operand.hbm [shape: f32[4,512], index: 2, kind: output, shape index: {}]
  %s3 = sld [smem:[#allocation0]]
  $region22: #{tpu_custom_call.1} parent=0
    _
  %s5 = ssub.s32 1, %s3
  %s6 = scalar_select 0, %s5, %s3
  $region1: #{tpu_custom_call.1} parent=0
    #allocation2 [shape = 'u8[12288]{0}', space=vmem, size = 0x3000, scoped, tag = 'input window, operand 0, single buffered']
    #allocation3 [shape = 's32[1]{0}', space=sflag, size = 0x4, scoped, tag = 'scoped memory for tpu_custom_call.1']
    #allocation4 [shape = 's32[1]{0}', space=sflag, size = 0x4, scoped, tag = 'scoped memory for tpu_custom_call.1']
    #allocation5 [shape = 'u8[8192]{0}', space=vmem, size = 0x2000, scoped, tag = 'output window, operand 0, single buffered']
    %7 = vsyncpa [#allocation3], 0
    %8 = vsyncpa [#allocation4], 0
    // Predicated region
    $region2: #{tpu_custom_call.1} parent=1 // pred_check
      _
    $region3: #{tpu_custom_call.1} parent=1 // pred_check_branch
      %10 = sbr.rel (0) target = $region5
    $region4: #{tpu_custom_call.1} parent=1 // pred_region
      %s12 = ssub.s32 384, 384
      %13 = vsyncadd [#allocation3], %s12
      %s14 = sshll.u32 [#allocation2], 4
      %s15 = int_to_ptr.vmem [resolvable:$true] %s14
      %20 = dma.hbm_to_vmem [thread:$0]  %s0, 384, %s15, [#allocation3], 128, 128, 8
    $region5: #{tpu_custom_call.1} parent=1 // pred_fallthru
      _
    // Predicated region
    $region6: #{tpu_custom_call.1} parent=1 // pred_check
      _
    $region7: #{tpu_custom_call.1} parent=1 // pred_check_branch
      %22 = sbr.rel (0) target = $region9
    $region8: #{tpu_custom_call.1} parent=1 // pred_region
      _
    $region9: #{tpu_custom_call.1} parent=1 // pred_fallthru
      _
    // Predicated region
    $region10: #{tpu_custom_call.1} parent=1 // pred_check
      _
    $region11: #{tpu_custom_call.1} parent=1 // pred_check_branch
      %24 = sbr.rel (0) target = $region13
    $region12: #{tpu_custom_call.1} parent=1 // pred_region
      %25 = dma.done [#allocation3], 384
    $region13: #{tpu_custom_call.1} parent=1 // pred_fallthru
      _
    %v26 = vld [vmem:[#allocation2] sm:$0xff]
    %v27 = vld [vmem:[#allocation2 + $0x8] sm:$0xff]
    %v28 = vld [vmem:[#allocation2 + $0x10] sm:$0xff]
    %v29 = vunpack.c.l.bf16 %v26
    %v30 = vunpack.c.h.bf16 %v26
    %v31 = vunpack.c.l.bf16 %v27
    %v32 = vunpack.c.h.bf16 %v27
    %v33 = vunpack.c.l.bf16 %v28
    %v34 = vunpack.c.h.bf16 %v28
    %v35 = vld [vmem:[%s1] sm:$0xf]
    %v36 = vld [vmem:[%s1 + $0x4] sm:$0xf]
    %v37 = vld [vmem:[%s1 + $0x8] sm:$0xf]
    %v38 = vunpack.c.l.bf16 %v35
    %v39 = vunpack.c.l.bf16 %v36
    %v40 = vunpack.c.l.bf16 %v37
    %v44 = vlaneseq
    %v45 = vshrl.u32 %v44, 7
    %v46 = vsub.s32 0, %v45
    %v47 = vrot.slane %v38, %v46
    %v48 = vlaneseq
    %v49 = vshrl.u32 %v48, 7
    %v50 = vsub.s32 2, %v49
    %v51 = vrot.slane %v38, %v50
    %v52 = vlaneseq
    %v53 = vshrl.u32 %v52, 7
    %v54 = vsub.s32 4, %v53
    %v55 = vrot.slane %v38, %v54
    %v56 = vlaneseq
    %v57 = vshrl.u32 %v56, 7
    %v58 = vsub.s32 6, %v57
    %v59 = vrot.slane %v38, %v58
    %v60 = vlaneseq
    %v61 = vshrl.u32 %v60, 7
    %v62 = vsub.s32 0, %v61
    %v63 = vrot.slane %v39, %v62
    %v64 = vlaneseq
    %v65 = vshrl.u32 %v64, 7
    %v66 = vsub.s32 2, %v65
    %v67 = vrot.slane %v39, %v66
    %v68 = vlaneseq
    %v69 = vshrl.u32 %v68, 7
    %v70 = vsub.s32 4, %v69
    %v71 = vrot.slane %v39, %v70
    %v72 = vlaneseq
    %v73 = vshrl.u32 %v72, 7
    %v74 = vsub.s32 6, %v73
    %v75 = vrot.slane %v39, %v74
    %v76 = vlaneseq
    %v77 = vshrl.u32 %v76, 7
    %v78 = vsub.s32 0, %v77
    %v79 = vrot.slane %v40, %v78
    %v80 = vlaneseq
    %v81 = vshrl.u32 %v80, 7
    %v82 = vsub.s32 2, %v81
    %v83 = vrot.slane %v40, %v82
    %v84 = vlaneseq
    %v85 = vshrl.u32 %v84, 7
    %v86 = vsub.s32 4, %v85
    %v87 = vrot.slane %v40, %v86
    %v88 = vlaneseq
    %v89 = vshrl.u32 %v88, 7
    %v90 = vsub.s32 6, %v89
    %v91 = vrot.slane %v40, %v90
    %v104 = vlaneseq
    %v105 = vshrl.u32 %v104, 7
    %v106 = vsub.s32 0, %v105
    %v107 = vrot.slane %v47, %v106
    %v108 = vlaneseq
    %v109 = vshrl.u32 %v108, 7
    %v110 = vsub.s32 0, %v109
    %v111 = vrot.slane %v51, %v110
    %v112 = vlaneseq
    %v113 = vshrl.u32 %v112, 7
    %v114 = vsub.s32 0, %v113
    %v115 = vrot.slane %v55, %v114
    %v116 = vlaneseq
    %v117 = vshrl.u32 %v116, 7
    %v118 = vsub.s32 0, %v117
    %v119 = vrot.slane %v59, %v118
    %v120 = vlaneseq
    %v121 = vshrl.u32 %v120, 7
    %v122 = vsub.s32 0, %v121
    %v123 = vrot.slane %v63, %v122
    %v124 = vlaneseq
    %v125 = vshrl.u32 %v124, 7
    %v126 = vsub.s32 0, %v125
    %v127 = vrot.slane %v67, %v126
    %v128 = vlaneseq
    %v129 = vshrl.u32 %v128, 7
    %v130 = vsub.s32 0, %v129
    %v131 = vrot.slane %v71, %v130
    %v132 = vlaneseq
    %v133 = vshrl.u32 %v132, 7
    %v134 = vsub.s32 0, %v133
    %v135 = vrot.slane %v75, %v134
    %v136 = vlaneseq
    %v137 = vshrl.u32 %v136, 7
    %v138 = vsub.s32 0, %v137
    %v139 = vrot.slane %v79, %v138
    %v140 = vlaneseq
    %v141 = vshrl.u32 %v140, 7
    %v142 = vsub.s32 0, %v141
    %v143 = vrot.slane %v83, %v142
    %v144 = vlaneseq
    %v145 = vshrl.u32 %v144, 7
    %v146 = vsub.s32 0, %v145
    %v147 = vrot.slane %v87, %v146
    %v148 = vlaneseq
    %v149 = vshrl.u32 %v148, 7
    %v150 = vsub.s32 0, %v149
    %v151 = vrot.slane %v91, %v150
    %v158 = vcombine.high %v29, %v29
    %v159 = vcombine.high %v30, %v30
    %v160 = vcombine.high %v31, %v31
    %v161 = vcombine.high %v32, %v32
    %v162 = vcombine.high %v33, %v33
    %v163 = vcombine.high %v34, %v34
    %v170 = vmul.f32 %v107, %v29
    %v171 = vmul.f32 %v111, %v158
    %v172 = vmul.f32 %v115, %v30
    %v173 = vmul.f32 %v119, %v159
    %v174 = vmul.f32 %v123, %v31
    %v175 = vmul.f32 %v127, %v160
    %v176 = vmul.f32 %v131, %v32
    %v177 = vmul.f32 %v135, %v161
    %v178 = vmul.f32 %v139, %v33
    %v179 = vmul.f32 %v143, %v162
    %v180 = vmul.f32 %v147, %v34
    %v181 = vmul.f32 %v151, %v163
    %vm182 = vcmask 1043456
    %v183 = vsel %vm182, %v170, 0.0
    %v184 = vsel %vm182, %v174, 0.0
    %v185 = vadd.f32 %v183, %v184
    %v186 = vsel %vm182, %v178, 0.0
    %v187 = vadd.f32 %v185, %v186
    %v188 = vsel %vm182, %v171, 0.0
    %v189 = vsel %vm182, %v175, 0.0
    %v190 = vadd.f32 %v188, %v189
    %v191 = vsel %vm182, %v179, 0.0
    %v192 = vadd.f32 %v190, %v191
    %v193 = vsel %vm182, %v172, 0.0
    %v194 = vsel %vm182, %v176, 0.0
    %v195 = vadd.f32 %v193, %v194
    %v196 = vsel %vm182, %v180, 0.0
    %v197 = vadd.f32 %v195, %v196
    %v198 = vsel %vm182, %v173, 0.0
    %v199 = vsel %vm182, %v177, 0.0
    %v200 = vadd.f32 %v198, %v199
    %v201 = vsel %vm182, %v181, 0.0
    %v202 = vadd.f32 %v200, %v201
    %v207 = vcombine.low %v187, %v192
    %v208 = vcombine.low %v197, %v202
    %211 = vst [vmem:[#allocation5] sm:$0xff] %v207
    %212 = vst [vmem:[#allocation5 + $0x8] sm:$0xff] %v208
    // Predicated region
    $region14: #{tpu_custom_call.1} parent=1 // pred_check
      _
    $region15: #{tpu_custom_call.1} parent=1 // pred_check_branch
      %214 = sbr.rel (0) target = $region17
    $region16: #{tpu_custom_call.1} parent=1 // pred_region
      %s216 = ssub.s32 256, 256
      %217 = vsyncadd [#allocation4], %s216
      %s219 = sshll.u32 [#allocation5], 4
      %s220 = int_to_ptr.vmem [resolvable:$true] %s219
      %222 = dma.vmem_to_hbm [thread:$0]  %s220, 256, %s2, [#allocation4]
    $region17: #{tpu_custom_call.1} parent=1 // pred_fallthru
      _
    // Predicated region
    $region18: #{tpu_custom_call.1} parent=1 // pred_check
      _
    $region19: #{tpu_custom_call.1} parent=1 // pred_check_branch
      %224 = sbr.rel (0) target = $region21
    $region20: #{tpu_custom_call.1} parent=1 // pred_region
      %225 = dma.done [#allocation4], 256
    $region21: #{tpu_custom_call.1} parent=1 // pred_fallthru
      _
    %226 = vsyncpa [#allocation3], 1
    %227 = vsyncpa [#allocation4], 1

</llo_original>
